<compile_context>
chip_gen: v5e
topology: v5e:2x2
jax: 0.10.0
libtpu: 0.0.40
codegen_flags: <defaults>
</compile_context>

<pallas_src>
import jax
import jax.numpy as jnp
from jax.experimental import pallas as pl
from jax.experimental.pallas import tpu as pltpu


def _degree_embed_add_kernel(x_ref, ind_ref, outd_ref, zin_ref, zout_ref, o_ref):
    tm = x_ref.shape[0]
    max_in = zin_ref.shape[0]
    max_out = zout_ref.shape[0]

    in_deg = ind_ref[...]      # (tm, 1) int32
    out_deg = outd_ref[...]    # (tm, 1) int32

    # One-hot gather of embedding rows on the MXU (tables are VMEM-resident).
    in_oh = (in_deg == jax.lax.broadcasted_iota(jnp.int32, (tm, max_in), 1)
             ).astype(zin_ref.dtype)
    out_oh = (out_deg == jax.lax.broadcasted_iota(jnp.int32, (tm, max_out), 1)
              ).astype(zout_ref.dtype)

    zin_rows = jnp.dot(in_oh, zin_ref[...], preferred_element_type=jnp.float32)
    zout_rows = jnp.dot(out_oh, zout_ref[...], preferred_element_type=jnp.float32)

    # Explicit f32 accumulation, cast back to the output dtype on store.
    o_ref[...] = (x_ref[...].astype(jnp.float32) + zin_rows + zout_rows
                  ).astype(o_ref.dtype)


def _choose_block_rows(n_nodes, node_dim, itemsize):
    # Budget ~8 MiB for the double-buffered x-in + x-out tiles (2 bufs each),
    # leaving ample headroom under the 32 MiB default scoped VMEM limit and
    # v7x's 64 MiB physical VMEM.
    budget_bytes = 8 * 1024 * 1024
    tm = budget_bytes // max(1, 4 * node_dim * itemsize)
    tm = int(min(max(tm, 8), 2048))
    tm = (tm // 8) * 8                       # keep sublane-aligned
    if n_nodes <= tm:
        return n_nodes                       # single full-extent block (legal)
    return tm


def degree_embed_add(x, z_in, z_out, in_degree, out_degree, *, block_rows=None):
    """Computes x + z_in[in_degree] + z_out[out_degree] with a Pallas kernel."""
    n_nodes, node_dim = x.shape
    max_in, _ = z_in.shape
    max_out, _ = z_out.shape

    if block_rows is None:
        block_rows = _choose_block_rows(n_nodes, node_dim, x.dtype.itemsize)
    tm = int(block_rows)

    in_deg2 = in_degree.astype(jnp.int32).reshape(n_nodes, 1)
    out_deg2 = out_degree.astype(jnp.int32).reshape(n_nodes, 1)

    grid = (pl.cdiv(n_nodes, tm),)

    return pl.pallas_call(
        _degree_embed_add_kernel,
        out_shape=jax.ShapeDtypeStruct((n_nodes, node_dim), x.dtype),
        grid=grid,
        in_specs=[
            pl.BlockSpec((tm, node_dim), lambda i: (i, 0)),       # x row tile
            pl.BlockSpec((tm, 1), lambda i: (i, 0)),              # in_degree tile
            pl.BlockSpec((tm, 1), lambda i: (i, 0)),              # out_degree tile
            pl.BlockSpec((max_in, node_dim), lambda i: (0, 0)),   # z_in (resident)
            pl.BlockSpec((max_out, node_dim), lambda i: (0, 0)),  # z_out (resident)
        ],
        out_specs=pl.BlockSpec((tm, node_dim), lambda i: (i, 0)),
        input_output_aliases={0: 0},   # x aliases the output (x += ...)
        compiler_params=pltpu.CompilerParams(
            dimension_semantics=("parallel",)),
    )(x, in_deg2, out_deg2, z_in, z_out)


class ExampleModelPallas:
    """JAX/Pallas equivalent of the PyTorch ExampleModel."""

    def __init__(self, max_in_degree, max_out_degree, node_dim, key):
        k1, k2 = jax.random.split(key)
        self.z_in = jax.random.normal(k1, (max_in_degree, node_dim), jnp.float32)
        self.z_out = jax.random.normal(k2, (max_out_degree, node_dim), jnp.float32)

    def __call__(self, x, in_degree, out_degree, *, block_rows=None):
        return degree_embed_add(x, self.z_in, self.z_out, in_degree, out_degree,
                                block_rows=block_rows)


if __name__ == "__main__":
    key = jax.random.PRNGKey(0)
    k_model, k_x, k_in, k_out = jax.random.split(key, 4)

    max_in_degree = 4
    max_out_degree = 5
    node_dim = 32
    n_nodes = 24

    model = ExampleModelPallas(max_in_degree, max_out_degree, node_dim, k_model)

    x = jax.random.normal(k_x, (n_nodes, node_dim), jnp.float32)
    in_degree = jax.random.randint(k_in, (n_nodes,), 0, max_in_degree, jnp.int32)
    out_degree = jax.random.randint(k_out, (n_nodes,), 0, max_out_degree, jnp.int32)

    # Pure-JAX reference (computed before the kernel since x aliases the output).
    ref = x + model.z_in[in_degree] + model.z_out[out_degree]

    # block_rows=8 forces a multi-step grid even at this small demo size.
    out = model(x, in_degree, out_degree, block_rows=8)
    out = jax.block_until_ready(out)

    assert out.shape == ref.shape and out.dtype == ref.dtype
    assert jnp.allclose(out, ref, atol=1e-5, rtol=1e-5)

    print("KERNEL_OK")
</pallas_src>

<mosaic_0001>
module attributes {stable_mosaic.version = 11 : i64} {
  func.func @_degree_embed_add_kernel(%arg0: i32, %arg1: memref<8x32xf32, #tpu.memory_space<vmem>>, %arg2: memref<8x1xi32, #tpu.memory_space<vmem>>, %arg3: memref<8x1xi32, #tpu.memory_space<vmem>>, %arg4: memref<4x32xf32, #tpu.memory_space<vmem>>, %arg5: memref<5x32xf32, #tpu.memory_space<vmem>>, %arg6: memref<8x32xf32, #tpu.memory_space<vmem>>) attributes {dimension_semantics = [#tpu.dimension_semantics<parallel>], iteration_bounds = array<i64: 3>, scalar_prefetch = 0 : i64, scratch_operands = 0 : i64, tpu.core_type = #tpu.core_type<tc>, window_params = [{transform_indices = @transform_0, window_bounds = array<i64: 8, 32>}, {transform_indices = @transform_1, window_bounds = array<i64: 8, 1>}, {transform_indices = @transform_2, window_bounds = array<i64: 8, 1>}, {pipeline_mode = #tpu.pipeline_mode<synchronous>, transform_indices = @transform_3, window_bounds = array<i64: 4, 32>}, {pipeline_mode = #tpu.pipeline_mode<synchronous>, transform_indices = @transform_4, window_bounds = array<i64: 5, 32>}, {transform_indices = @transform_5, window_bounds = array<i64: 8, 32>}]} {
    %c0 = arith.constant 0 : index
    %c0_0 = arith.constant 0 : index
    %0 = vector.load %arg2[%c0, %c0_0] : memref<8x1xi32, #tpu.memory_space<vmem>>, vector<8x1xi32>
    %c0_1 = arith.constant 0 : index
    %c0_2 = arith.constant 0 : index
    %1 = vector.load %arg3[%c0_1, %c0_2] : memref<8x1xi32, #tpu.memory_space<vmem>>, vector<8x1xi32>
    %2 = tpu.iota {dimensions = array<i32: 1>} : vector<8x4xi32>
    %3 = vector.broadcast %0 : vector<8x1xi32> to vector<8x4xi32>
    %4 = arith.cmpi eq, %3, %2 : vector<8x4xi32>
    %5 = arith.extui %4 : vector<8x4xi1> to vector<8x4xi32>
    %6 = arith.sitofp %5 : vector<8x4xi32> to vector<8x4xf32>
    %7 = tpu.iota {dimensions = array<i32: 1>} : vector<8x5xi32>
    %8 = vector.broadcast %1 : vector<8x1xi32> to vector<8x5xi32>
    %9 = arith.cmpi eq, %8, %7 : vector<8x5xi32>
    %10 = arith.extui %9 : vector<8x5xi1> to vector<8x5xi32>
    %11 = arith.sitofp %10 : vector<8x5xi32> to vector<8x5xf32>
    %c0_3 = arith.constant 0 : index
    %c0_4 = arith.constant 0 : index
    %12 = vector.load %arg4[%c0_3, %c0_4] : memref<4x32xf32, #tpu.memory_space<vmem>>, vector<4x32xf32>
    %cst = arith.constant dense<0.000000e+00> : vector<8x32xf32>
    %13 = tpu.matmul %6, %12, %cst {dimension_numbers = #tpu.dot_dimension_numbers<[1], [0], [0], [1], [0, 0, 1, 1], [], []>} : vector<8x4xf32>, vector<4x32xf32>, vector<8x32xf32> -> vector<8x32xf32>
    %c0_5 = arith.constant 0 : index
    %c0_6 = arith.constant 0 : index
    %14 = vector.load %arg5[%c0_5, %c0_6] : memref<5x32xf32, #tpu.memory_space<vmem>>, vector<5x32xf32>
    %cst_7 = arith.constant dense<0.000000e+00> : vector<8x32xf32>
    %15 = tpu.matmul %11, %14, %cst_7 {dimension_numbers = #tpu.dot_dimension_numbers<[1], [0], [0], [1], [0, 0, 1, 1], [], []>} : vector<8x5xf32>, vector<5x32xf32>, vector<8x32xf32> -> vector<8x32xf32>
    %c0_8 = arith.constant 0 : index
    %c0_9 = arith.constant 0 : index
    %16 = vector.load %arg1[%c0_8, %c0_9] : memref<8x32xf32, #tpu.memory_space<vmem>>, vector<8x32xf32>
    %17 = arith.addf %16, %13 : vector<8x32xf32>
    %18 = arith.addf %17, %15 : vector<8x32xf32>
    %c0_10 = arith.constant 0 : index
    %c0_11 = arith.constant 0 : index
    %19 = vector.load %arg6[%c0_10, %c0_11] : memref<8x32xf32, #tpu.memory_space<vmem>>, vector<8x32xf32>
    tpu.vector_store %arg6[%c0_10, %c0_11], %18 {strides = array<i32>} : memref<8x32xf32, #tpu.memory_space<vmem>>, vector<8x32xf32>,
    return
  }
  func.func @transform_0(%arg0: i32) -> (i32, i32) {
    %c0_i32 = arith.constant 0 : i32
    %c0_i32_0 = arith.constant 0 : i32
    return %arg0, %c0_i32 : i32, i32
  }
  func.func @transform_1(%arg0: i32) -> (i32, i32) {
    %c0_i32 = arith.constant 0 : i32
    %c0_i32_0 = arith.constant 0 : i32
    return %arg0, %c0_i32 : i32, i32
  }
  func.func @transform_2(%arg0: i32) -> (i32, i32) {
    %c0_i32 = arith.constant 0 : i32
    %c0_i32_0 = arith.constant 0 : i32
    return %arg0, %c0_i32 : i32, i32
  }
  func.func @transform_3(%arg0: i32) -> (i32, i32) {
    %c0_i32 = arith.constant 0 : i32
    %c0_i32_0 = arith.constant 0 : i32
    %c0_i32_1 = arith.constant 0 : i32
    return %c0_i32, %c0_i32_0 : i32, i32
  }
  func.func @transform_4(%arg0: i32) -> (i32, i32) {
    %c0_i32 = arith.constant 0 : i32
    %c0_i32_0 = arith.constant 0 : i32
    %c0_i32_1 = arith.constant 0 : i32
    return %c0_i32, %c0_i32_0 : i32, i32
  }
  func.func @transform_5(%arg0: i32) -> (i32, i32) {
    %c0_i32 = arith.constant 0 : i32
    %c0_i32_0 = arith.constant 0 : i32
    return %arg0, %c0_i32 : i32, i32
  }
}

</mosaic_0001>

<llo_original>
// kernel: tpu_custom_call.1
$region0: #{tpu_custom_call.1}
  #allocation0 [shape = 'u32[]', space=smem, size = 0x4, offset = 0x4, fixed_abs, tag = 'smem constant byte address 0x4 - core index']
  #allocation1 [shape = 'u32[72,128]{1,0:T(1,128)}', space=vmem, size = 0x9000, scoped, tag = 'internal scratch']
  %s0 = inlined_call_operand.hbm [shape: f32[24,32], index: 0, kind: input, shape index: {}, may-alias: {0,5}]
  %s1 = inlined_call_operand.vmem [shape: s32[24,1], index: 1, kind: input, shape index: {}]
  %s2 = inlined_call_operand.vmem [shape: s32[24,1], index: 2, kind: input, shape index: {}]
  %s3 = inlined_call_operand.vmem [shape: f32[4,32], index: 3, kind: input, shape index: {}]
  %s4 = inlined_call_operand.vmem [shape: f32[5,32], index: 4, kind: input, shape index: {}]
  %s5 = inlined_call_operand.hbm [shape: f32[24,32], index: 5, kind: output, shape index: {}, may-alias: {0,5}]
  %s6 = sld [smem:[#allocation0]]
  $region57: #{tpu_custom_call.1} parent=0
    _
  %s8 = ssub.s32 1, %s6
  %s9 = scalar_select 0, %s8, %s6
  $region1: #{tpu_custom_call.1} parent=0
    #allocation2 [shape = 'u8[8192]{0}', space=vmem, size = 0x2000, scoped, tag = 'input window, operand 0']
    #allocation3 [shape = 's32[2]{0}', space=sflag, size = 0x8, scoped, tag = 'scoped memory for tpu_custom_call.1']
    #allocation4 [shape = 's32[2]{0}', space=sflag, size = 0x8, scoped, tag = 'scoped memory for tpu_custom_call.1']
    #allocation5 [shape = 'u8[8192]{0}', space=vmem, size = 0x2000, scoped, tag = 'output window, operand 0']
    %10 = vsyncpa [#allocation3], 0
    %s11 = scalar_lea.sflag [#allocation3], 1
    %12 = vsyncpa %s11, 0
    %13 = vsyncpa [#allocation4], 0
    %s14 = scalar_lea.sflag [#allocation4], 1
    %15 = vsyncpa %s14, 0
    loop: start=0, step=1, limit=5
    $region2: #{tpu_custom_call.1} parent=1 // loop_pre_header
      _
    $region3: #{tpu_custom_call.1} parent=1 // loop_header
      %s17 = sphi 0, %s21
      %p18 = scmp.ge.s32.totalorder %s17, 5
      %s27 = sphi 0, %s29
      %s30 = sphi 0, %s27
      %s31 = sphi 0, %s30
      %s47 = sphi 0, %s31
      %s53 = sphi 0, %s55
      %s56 = sphi 0, %s53
      %s57 = sphi 0, %s56
      %s73 = sphi 0, %s57
      %s79 = sphi 0, %s81
      %s82 = sphi 0, %s79
      %s83 = sphi 0, %s82
      %s99 = sphi 0, %s83
      %s103 = sphi 0, %s103
      %s105 = sphi 0, %s103
      %s106 = sphi 0, %s105
      %s120 = sphi 0, %s106
      %s124 = sphi 0, %s124
      %s126 = sphi 0, %s124
      %s127 = sphi 0, %s126
      %s141 = sphi 0, %s127
      %s147 = sphi 0, %s149
      %s150 = sphi 0, %s147
      %s151 = sphi 0, %s150
      %s167 = sphi 0, %s151
    $region4: #{tpu_custom_call.1} parent=1 // loop_header_branch
      %20 = sbr.rel (%p18) target = $region8
    $region5: #{tpu_custom_call.1} parent=1 // loop_body
      %s22 = ssub.s32 %s17, 1
      %s23 = ssub.s32 %s17, 2
      %s24 = sadd.s32 %s17, 1
      %s25 = ssub.s32 %s17, %s24
      %p26 = scmp.eq.s32.totalorder %s25, 0
      %s28 = sadd.s32 %s27, 1
      %s29 = scalar_select %p26, %s27, %s28
      %p32 = pneg %p26
      %p33 = scmp.eq.s32.totalorder %s17, 2
      %p34 = por %p32, %p33
      %p35 = scmp.ne.s32.totalorder %s27, %s30
      %p36 = scmp.eq.s32.totalorder %s17, 0
      %p37 = por %p35, %p36
      %p38 = scmp.ne.s32.totalorder %s27, %s30
      %p39 = scmp.eq.s32.totalorder %s22, 2
      %p40 = por %p38, %p39
      %p41 = scmp.ne.s32.totalorder %s30, %s31
      %p42 = scmp.eq.s32.totalorder %s22, 0
      %p43 = por %p41, %p42
      %p44 = scmp.ne.s32.totalorder %s30, %s31
      %p45 = scmp.eq.s32.totalorder %s23, 2
      %p46 = por %p44, %p45
      %p48 = scmp.ne.s32.totalorder %s31, %s47
      %p49 = scmp.eq.s32.totalorder %s23, 0
      %p50 = por %p48, %p49
      %s51 = ssub.s32 %s17, %s24
      %p52 = scmp.eq.s32.totalorder %s51, 0
      %s54 = sadd.s32 %s53, 1
      %s55 = scalar_select %p52, %s53, %s54
      %p58 = pneg %p52
      %p59 = scmp.eq.s32.totalorder %s17, 2
      %p60 = por %p58, %p59
      %p61 = scmp.ne.s32.totalorder %s53, %s56
      %p62 = scmp.eq.s32.totalorder %s17, 0
      %p63 = por %p61, %p62
      %p64 = scmp.ne.s32.totalorder %s53, %s56
      %p65 = scmp.eq.s32.totalorder %s22, 2
      %p66 = por %p64, %p65
      %p67 = scmp.ne.s32.totalorder %s56, %s57
      %p68 = scmp.eq.s32.totalorder %s22, 0
      %p69 = por %p67, %p68
      %p70 = scmp.ne.s32.totalorder %s56, %s57
      %p71 = scmp.eq.s32.totalorder %s23, 2
      %p72 = por %p70, %p71
      %p74 = scmp.ne.s32.totalorder %s57, %s73
      %p75 = scmp.eq.s32.totalorder %s23, 0
      %p76 = por %p74, %p75
      %s77 = ssub.s32 %s17, %s24
      %p78 = scmp.eq.s32.totalorder %s77, 0
      %s80 = sadd.s32 %s79, 1
      %s81 = scalar_select %p78, %s79, %s80
      %p84 = pneg %p78
      %p85 = scmp.eq.s32.totalorder %s17, 2
      %p86 = por %p84, %p85
      %p87 = scmp.ne.s32.totalorder %s79, %s82
      %p88 = scmp.eq.s32.totalorder %s17, 0
      %p89 = por %p87, %p88
      %p90 = scmp.ne.s32.totalorder %s79, %s82
      %p91 = scmp.eq.s32.totalorder %s22, 2
      %p92 = por %p90, %p91
      %p93 = scmp.ne.s32.totalorder %s82, %s83
      %p94 = scmp.eq.s32.totalorder %s22, 0
      %p95 = por %p93, %p94
      %p96 = scmp.ne.s32.totalorder %s82, %s83
      %p97 = scmp.eq.s32.totalorder %s23, 2
      %p98 = por %p96, %p97
      %p100 = scmp.ne.s32.totalorder %s83, %s99
      %p101 = scmp.eq.s32.totalorder %s23, 0
      %p102 = por %p100, %p101
      %s104 = sadd.s32 %s103, 1
      %p107 = scmp.eq.s32.totalorder %s17, 2
      %p108 = scmp.ne.s32.totalorder %s103, %s105
      %p109 = scmp.eq.s32.totalorder %s17, 0
      %p110 = por %p108, %p109
      %p111 = scmp.ne.s32.totalorder %s103, %s105
      %p112 = scmp.eq.s32.totalorder %s22, 2
      %p113 = por %p111, %p112
      %p114 = scmp.ne.s32.totalorder %s105, %s106
      %p115 = scmp.eq.s32.totalorder %s22, 0
      %p116 = por %p114, %p115
      %p117 = scmp.ne.s32.totalorder %s105, %s106
      %p118 = scmp.eq.s32.totalorder %s23, 2
      %p119 = por %p117, %p118
      %p121 = scmp.ne.s32.totalorder %s106, %s120
      %p122 = scmp.eq.s32.totalorder %s23, 0
      %p123 = por %p121, %p122
      %s125 = sadd.s32 %s124, 1
      %p128 = scmp.eq.s32.totalorder %s17, 2
      %p129 = scmp.ne.s32.totalorder %s124, %s126
      %p130 = scmp.eq.s32.totalorder %s17, 0
      %p131 = por %p129, %p130
      %p132 = scmp.ne.s32.totalorder %s124, %s126
      %p133 = scmp.eq.s32.totalorder %s22, 2
      %p134 = por %p132, %p133
      %p135 = scmp.ne.s32.totalorder %s126, %s127
      %p136 = scmp.eq.s32.totalorder %s22, 0
      %p137 = por %p135, %p136
      %p138 = scmp.ne.s32.totalorder %s126, %s127
      %p139 = scmp.eq.s32.totalorder %s23, 2
      %p140 = por %p138, %p139
      %p142 = scmp.ne.s32.totalorder %s127, %s141
      %p143 = scmp.eq.s32.totalorder %s23, 0
      %p144 = por %p142, %p143
      %s145 = ssub.s32 %s17, %s24
      %p146 = scmp.eq.s32.totalorder %s145, 0
      %s148 = sadd.s32 %s147, 1
      %s149 = scalar_select %p146, %s147, %s148
      %p152 = pneg %p146
      %p153 = scmp.eq.s32.totalorder %s17, 2
      %p154 = por %p152, %p153
      %p155 = scmp.ne.s32.totalorder %s147, %s150
      %p156 = scmp.eq.s32.totalorder %s17, 0
      %p157 = por %p155, %p156
      %p158 = scmp.ne.s32.totalorder %s147, %s150
      %p159 = scmp.eq.s32.totalorder %s22, 2
      %p160 = por %p158, %p159
      %p161 = scmp.ne.s32.totalorder %s150, %s151
      %p162 = scmp.eq.s32.totalorder %s22, 0
      %p163 = por %p161, %p162
      %p164 = scmp.ne.s32.totalorder %s150, %s151
      %p165 = scmp.eq.s32.totalorder %s23, 2
      %p166 = por %p164, %p165
      %p168 = scmp.ne.s32.totalorder %s151, %s167
      %p169 = scmp.eq.s32.totalorder %s23, 0
      %p170 = por %p168, %p169
      %p171 = scmp.le.s32.totalorder 1, %s17
      %p172 = scmp.lt.s32.totalorder %s17, 4
      %p173 = pnand %p171, %p172
      %p174 = pneg %p173
      // Predicated region
      $region9: #{tpu_custom_call.1} parent=5 // pred_check
        _
      $region10: #{tpu_custom_call.1} parent=5 // pred_check_branch
        %176 = sbr.rel (%p173) target = $region12
      $region11: #{tpu_custom_call.1} parent=5 // pred_region
        %s177 = ssub.s32 %s17, 1
        // Predicated region
        $region13: #{tpu_custom_call.1} parent=11 // pred_check
          %p178 = pneg %p116
        $region14: #{tpu_custom_call.1} parent=11 // pred_check_branch
          %180 = sbr.rel (%p178) target = $region16
        $region15: #{tpu_custom_call.1} parent=11 // pred_region
          _
        $region16: #{tpu_custom_call.1} parent=11 // pred_fallthru
          _
        // Predicated region
        $region17: #{tpu_custom_call.1} parent=11 // pred_check
          %p181 = pneg %p137
        $region18: #{tpu_custom_call.1} parent=11 // pred_check_branch
          %183 = sbr.rel (%p181) target = $region20
        $region19: #{tpu_custom_call.1} parent=11 // pred_region
          _
        $region20: #{tpu_custom_call.1} parent=11 // pred_fallthru
          _
      $region12: #{tpu_custom_call.1} parent=5 // pred_fallthru
        _
      %p184 = scmp.lt.s32.totalorder %s17, 3
      // Predicated region
      $region21: #{tpu_custom_call.1} parent=5 // pred_check
        %p185 = pneg %p184
      $region22: #{tpu_custom_call.1} parent=5 // pred_check_branch
        %187 = sbr.rel (%p185) target = $region24
      $region23: #{tpu_custom_call.1} parent=5 // pred_region
        // Predicated region
        $region25: #{tpu_custom_call.1} parent=23 // pred_check
          %p188 = pneg %p37
        $region26: #{tpu_custom_call.1} parent=23 // pred_check_branch
          %190 = sbr.rel (%p188) target = $region28
        $region27: #{tpu_custom_call.1} parent=23 // pred_region
          %s191 = sand.u32 %s27, 1
          %s192 = scalar_lea.sflag [#allocation3], %s191
          %s193 = sand.u32 %s27, 1
          %s194 = smul.addr %s193, 8
          %s195 = scalar_lea.vmem [#allocation2], %s194
          %197 = vsyncadd %s192, 0
          %s198 = smul.addr %s17, 8
          %s199 = scalar_lea.hbm %s0, %s198
          %s201 = sshll.u32 %s199, 4
          %s202 = int_to_ptr.hbm [resolvable:$true] %s201
          %s203 = sshll.u32 %s195, 4
          %s204 = int_to_ptr.vmem [resolvable:$true] %s203
          %206 = dma.hbm_to_vmem [thread:$0]  %s202, 128, %s204, %s192
        $region28: #{tpu_custom_call.1} parent=23 // pred_fallthru
          _
        // Predicated region
        $region29: #{tpu_custom_call.1} parent=23 // pred_check
          %p207 = pneg %p63
        $region30: #{tpu_custom_call.1} parent=23 // pred_check_branch
          %209 = sbr.rel (%p207) target = $region32
        $region31: #{tpu_custom_call.1} parent=23 // pred_region
          %p210 = scmp.lt.s32.totalorder %s17, 2
          %s211 = scalar_select %p210, %s17, 2
          %s212 = smul.addr %s211, 8
          %s213 = scalar_lea.vmem %s1, %s212
        $region32: #{tpu_custom_call.1} parent=23 // pred_fallthru
          _
        // Predicated region
        $region33: #{tpu_custom_call.1} parent=23 // pred_check
          %p214 = pneg %p89
        $region34: #{tpu_custom_call.1} parent=23 // pred_check_branch
          %216 = sbr.rel (%p214) target = $region36
        $region35: #{tpu_custom_call.1} parent=23 // pred_region
          %p217 = scmp.lt.s32.totalorder %s17, 2
          %s218 = scalar_select %p217, %s17, 2
          %s219 = smul.addr %s218, 8
          %s220 = scalar_lea.vmem %s2, %s219
        $region36: #{tpu_custom_call.1} parent=23 // pred_fallthru
          _
      $region24: #{tpu_custom_call.1} parent=5 // pred_fallthru
        _
      %p221 = scmp.le.s32.totalorder 1, %s17
      %p222 = scmp.lt.s32.totalorder %s17, 4
      %p223 = pnand %p221, %p222
      %p224 = pneg %p223
      // Predicated region
      $region37: #{tpu_custom_call.1} parent=5 // pred_check
        _
      $region38: #{tpu_custom_call.1} parent=5 // pred_check_branch
        %226 = sbr.rel (%p223) target = $region40
      $region39: #{tpu_custom_call.1} parent=5 // pred_region
        %s227 = ssub.s32 %s17, 1
        %s228 = sand.u32 %s30, 1
        %s229 = scalar_lea.sflag [#allocation3], %s228
        %s230 = sand.u32 %s30, 1
        %s231 = smul.addr %s230, 8
        %s232 = scalar_lea.vmem [#allocation2], %s231
        // Predicated region
        $region41: #{tpu_custom_call.1} parent=39 // pred_check
          %p233 = pneg %p43
        $region42: #{tpu_custom_call.1} parent=39 // pred_check_branch
          %235 = sbr.rel (%p233) target = $region44
        $region43: #{tpu_custom_call.1} parent=39 // pred_region
          %237 = dma.done %s229, 128
        $region44: #{tpu_custom_call.1} parent=39 // pred_fallthru
          _
        %s238 = sand.u32 %s30, 1
        %s239 = scalar_lea.sflag [#allocation3], %s238
        %s240 = sand.u32 %s30, 1
        %s241 = smul.addr %s240, 8
        %s242 = scalar_lea.vmem [#allocation2], %s241
        %p243 = pneg %p43
        %p244 = pneg %p40
        %p245 = scmp.lt.s32.totalorder %s22, 2
        %s246 = scalar_select %p245, %s22, 2
        %s247 = smul.addr %s246, 8
        %s248 = scalar_lea.vmem %s1, %s247
        %p249 = pneg %p69
        %p250 = pneg %p66
        %p251 = scmp.lt.s32.totalorder %s22, 2
        %s252 = scalar_select %p251, %s22, 2
        %s253 = smul.addr %s252, 8
        %s254 = scalar_lea.vmem %s2, %s253
        %p255 = pneg %p95
        %p256 = pneg %p92
        %p257 = pneg %p116
        %p258 = pneg %p113
        %p259 = pneg %p137
        %p260 = pneg %p134
        %p261 = pneg %p163
        %p262 = pneg %p160
        %s263 = sand.u32 %s150, 1
        %s264 = scalar_lea.sflag [#allocation4], %s263
        %s265 = sand.u32 %s150, 1
        %s266 = smul.addr %s265, 8
        %s267 = scalar_lea.vmem [#allocation5], %s266
        %p268 = scmp.lt.s32.totalorder %s22, 2
        %s269 = scalar_select %p268, %s22, 2
        %s270 = smul.addr %s269, 8
        %s271 = scalar_lea.vmem %s1, %s270
        %p272 = scmp.lt.s32.totalorder %s22, 2
        %s273 = scalar_select %p272, %s22, 2
        %s274 = smul.addr %s273, 8
        %s275 = scalar_lea.vmem %s2, %s274
        %v276 = vld [vmem:[%s271] sm:$0xff]
        %v277 = vld [vmem:[%s275] sm:$0xff]
        %v278 = vlaneseq
        %v279 = vand.u32 %v278, 127
        %280 = vset.pattern.permute.xlu0 0
        %281 = vperm.xlu0 %280, %v276
        %v282 = vpop.permute.xlu0 %281
        %vm283 = vcmp.eq.s32.totalorder %v282, %v279
        %v284 = vsel %vm283, 1, 0
        %v285 = vcvt.s32.f32 %v284
        %286 = vset.pattern.permute.xlu0 0
        %287 = vperm.xlu0 %286, %v277
        %v288 = vpop.permute.xlu0 %287
        %vm289 = vcmp.eq.s32.totalorder %v288, %v279
        %v290 = vsel %vm289, 1, 0
        %v291 = vcvt.s32.f32 %v290
        %v292 = vld [vmem:[%s3] sm:$0xf]
        %vm293 = vcmask 31744
        %v295 = vsel %vm293, %v285, 0
        %vm297 = vcmask 1043456
        %v299 = vsel %vm297, %v292, 0
        %301 = vmatpush.msra.mxu0 0.0
        %302 = vmatpush.msra.mxu0 0.0
        %303 = vmatpush.msra.mxu0 0.0
        %304 = vmatpush.msra.mxu0 0.0
        %305 = vmatpush.msra.mxu0 0.0
        %306 = vmatpush.msra.mxu0 0.0
        %307 = vmatpush.msra.mxu0 0.0
        %308 = vmatpush.msra.mxu0 0.0
        %309 = vmatpush.msra.mxu0 0.0
        %310 = vmatpush.msra.mxu0 0.0
        %311 = vmatpush.msra.mxu0 0.0
        %312 = vmatpush.msra.mxu0 0.0
        %313 = vmatpush.msra.mxu0 0.0
        %314 = vmatpush.msra.mxu0 0.0
        %315 = vmatpush.msra.mxu0 0.0
        %316 = vmatpush.msra.mxu0 %v299
        %317 = vmatmul.f32.gmra.mxu0 %v295
        %v318 = vpop.f32.mrf.mxu0
        %v319 = vadd.f32 0.0, %v318
        %320 = vdwg.mxu0
        %v321 = vld [vmem:[%s4] sm:$0x1f]
        %vm322 = vcmask 39936
        %v324 = vsel %vm322, %v291, 0
        %vm326 = vcmask 1044480
        %v328 = vsel %vm326, %v321, 0
        %330 = vmatpush.msra.mxu0 0.0
        %331 = vmatpush.msra.mxu0 0.0
        %332 = vmatpush.msra.mxu0 0.0
        %333 = vmatpush.msra.mxu0 0.0
        %334 = vmatpush.msra.mxu0 0.0
        %335 = vmatpush.msra.mxu0 0.0
        %336 = vmatpush.msra.mxu0 0.0
        %337 = vmatpush.msra.mxu0 0.0
        %338 = vmatpush.msra.mxu0 0.0
        %339 = vmatpush.msra.mxu0 0.0
        %340 = vmatpush.msra.mxu0 0.0
        %341 = vmatpush.msra.mxu0 0.0
        %342 = vmatpush.msra.mxu0 0.0
        %343 = vmatpush.msra.mxu0 0.0
        %344 = vmatpush.msra.mxu0 0.0
        %345 = vmatpush.msra.mxu0 %v328
        %346 = vmatmul.f32.gmra.mxu0 %v324
        %v347 = vpop.f32.mrf.mxu0
        %v348 = vadd.f32 0.0, %v347
        %349 = vdwg.mxu0
        %v350 = vld [vmem:[%s232] sm:$0xff]
        %v351 = vadd.f32 %v350, %v319
        %v352 = vadd.f32 %v351, %v348
        %vm353 = vcmask 261120
        %354 = vst.msk [vmem:[%s267] sm:$0xff] %vm353, %v352
        %s355 = sand.u32 %s150, 1
        %s356 = scalar_lea.sflag [#allocation4], %s355
        %s357 = sand.u32 %s150, 1
        %s358 = smul.addr %s357, 8
        %s359 = scalar_lea.vmem [#allocation5], %s358
        // Predicated region
        $region45: #{tpu_custom_call.1} parent=39 // pred_check
          %p360 = pneg %p160
        $region46: #{tpu_custom_call.1} parent=39 // pred_check_branch
          %362 = sbr.rel (%p360) target = $region48
        $region47: #{tpu_custom_call.1} parent=39 // pred_region
          %364 = vsyncadd %s356, 0
          %s365 = smul.addr %s22, 8
          %s366 = scalar_lea.hbm %s5, %s365
          %s368 = sshll.u32 %s359, 4
          %s369 = int_to_ptr.vmem [resolvable:$true] %s368
          %s370 = sshll.u32 %s366, 4
          %s371 = int_to_ptr.hbm [resolvable:$true] %s370
          %373 = dma.vmem_to_hbm [thread:$0]  %s369, 128, %s371, %s356
        $region48: #{tpu_custom_call.1} parent=39 // pred_fallthru
          _
      $region40: #{tpu_custom_call.1} parent=5 // pred_fallthru
        _
      %p374 = scmp.le.s32.totalorder 2, %s17
      // Predicated region
      $region49: #{tpu_custom_call.1} parent=5 // pred_check
        %p375 = pneg %p374
      $region50: #{tpu_custom_call.1} parent=5 // pred_check_branch
        %377 = sbr.rel (%p375) target = $region52
      $region51: #{tpu_custom_call.1} parent=5 // pred_region
        %s378 = ssub.s32 %s17, 2
        // Predicated region
        $region53: #{tpu_custom_call.1} parent=51 // pred_check
          %p379 = pneg %p166
        $region54: #{tpu_custom_call.1} parent=51 // pred_check_branch
          %381 = sbr.rel (%p379) target = $region56
        $region55: #{tpu_custom_call.1} parent=51 // pred_region
          %s382 = sand.u32 %s151, 1
          %s383 = scalar_lea.sflag [#allocation4], %s382
          %s384 = sand.u32 %s151, 1
          %s385 = smul.addr %s384, 8
          %s386 = scalar_lea.vmem [#allocation5], %s385
          %388 = dma.done %s383, 128
        $region56: #{tpu_custom_call.1} parent=51 // pred_fallthru
          _
      $region52: #{tpu_custom_call.1} parent=5 // pred_fallthru
        _
    $region6: #{tpu_custom_call.1} parent=1 // loop_footer
      %s21 = sadd.s32 1, %s17
    $region7: #{tpu_custom_call.1} parent=1 // loop_footer_branch
      %16 = sbr.rel target = $region3
    $region8: #{tpu_custom_call.1} parent=1 // loop_exit
      _
    %389 = vsyncpa [#allocation3], 1
    %s390 = scalar_lea.sflag [#allocation3], 1
    %391 = vsyncpa %s390, 1
    %392 = vsyncpa [#allocation4], 1
    %s393 = scalar_lea.sflag [#allocation4], 1
    %394 = vsyncpa %s393, 1

</llo_original>
